<compile_context>
chip_gen: v7x
topology: tpu7x:2x2x1
jax: 0.10.0
libtpu: 0.0.40
codegen_flags: <defaults>
</compile_context>

<pallas_src>
import numpy as np
import jax
import jax.numpy as jnp
from jax.experimental import pallas as pl
from jax.experimental.pallas import tpu as pltpu

LEAKY_SLOPE = 0.01     # nn.LeakyReLU() default
LANE = 128
SUBLANE = 8


def _ru(n, m):
    return ((n + m - 1) // m) * m


# ------------------------------- the kernel -------------------------------- #
def _koopman_kernel(pars_ref, xt_ref, w1_ref, b1_ref, w2s_ref, b2s_ref, r_ref,
                    kflat_ref, out_ref):
    # fused first Linear of the three parameter MLPs (+ LeakyReLU),
    # all three heads packed into one 128-lane hidden block
    h = jnp.dot(pars_ref[...], w1_ref[...],
                preferred_element_type=jnp.float32) + b1_ref[...]
    h = jnp.where(h > 0, h, LEAKY_SLOPE * h)
    # fused (second Linear  @  band-scatter) -> flat Koopman matrix, one dot
    k_flat = jnp.dot(h, w2s_ref[...],
                     preferred_element_type=jnp.float32) + b2s_ref[...]
    # batched mat-vec: out[b, i] = sum_j K[b, i, j] * x[b, j]
    # xt[b, i*D+j] = x[b, j] was built lane-dense in the wrapper (no T matmul)
    out = jnp.dot(k_flat * xt_ref[...], r_ref[...].astype(jnp.float32),
                  preferred_element_type=jnp.float32)
    kflat_ref[...] = k_flat
    out_ref[...] = out


# ------------------------------- the module -------------------------------- #
class PallasKoopman:
    def __init__(self, key, latent_dim, par_dim, hidden_neurons, num_diags=2):
        # NB: the PyTorch reference itself crashes for num_diags == 1
        # (np.concatenate of an empty list), so we require >= 2.
        assert num_diags >= 2, "num_diags must be >= 2 (as in the reference)"
        D, P, H = latent_dim, par_dim, hidden_neurons
        self.latent_dim, self.par_dim, self.hidden_neurons = D, P, H
        self.num_diags = num_diags

        # off-diagonal index sets, same ordering as the PyTorch module
        off_x = np.concatenate([np.arange(0, D - i) for i in range(1, num_diags)])
        off_y = np.concatenate([np.arange(i, D) for i in range(1, num_diags)])
        n_off = int(off_x.shape[0])
        self.n_off = n_off

        # ---- deterministic synthetic parameters (PyTorch Linear layout) ----
        keys = iter(jax.random.split(key, 16))

        def rnd(shape, s=0.1):
            return s * jax.random.normal(next(keys), shape, jnp.float32)

        self.W1d, self.b1d = rnd((H, P)), rnd((H,))        # pars_nn_diagonal
        self.W2d, self.b2d = rnd((D, H)), rnd((D,))
        self.W1u, self.b1u = rnd((H, P)), rnd((H,))        # pars_nn_upper_diagonal
        self.W2u, self.b2u = rnd((n_off, H)), rnd((n_off,))
        self.W1l, self.b1l = rnd((H, P)), rnd((H,))        # pars_nn_lower_diagonal
        self.W2l, self.b2l = rnd((n_off, H)), rnd((n_off,))

        # -------- one-time host-side fused / lane-padded operand build ------
        P_pad = _ru(P, LANE)
        HP = _ru(3 * H, LANE)          # packed hidden block (96 -> 128 for H=32)
        DD = D * D
        DD_pad = _ru(DD, LANE)
        Do_pad = _ru(D, LANE)
        self._P_pad, self._HP = P_pad, HP
        self._DD, self._DD_pad, self._Do_pad = DD, DD_pad, Do_pad

        # flat-column index of each written Koopman entry
        diag_cols = np.arange(D) * D + np.arange(D)
        up_cols = off_x * D + off_y
        lo_cols = off_y * D + off_x
        all_cols = np.concatenate([diag_cols, up_cols, lo_cols])
        # additive scatter == at[].set only if the index sets are disjoint
        assert np.unique(all_cols).size == all_cols.size, \
            "diag/upper/lower index sets must be disjoint"

        # fused first layers (shared input pars), heads packed: (P_pad, HP)
        w1 = np.zeros((P_pad, HP), np.float32)
        b1 = np.zeros((1, HP), np.float32)
        for k, (W, b) in enumerate([(self.W1d, self.b1d),
                                    (self.W1u, self.b1u),
                                    (self.W1l, self.b1l)]):
            w1[:P, k * H:(k + 1) * H] = np.asarray(W).T
            b1[0, k * H:(k + 1) * H] = np.asarray(b)

        # second layers folded with the band scatter: (HP, DD_pad)
        w2s = np.zeros((HP, DD_pad), np.float32)
        b2s = np.zeros((1, DD_pad), np.float32)
        w2s[0 * H:1 * H, diag_cols] = np.asarray(self.W2d).T   # K[i, i]
        w2s[1 * H:2 * H, up_cols] = np.asarray(self.W2u).T     # K[ox, oy]
        w2s[2 * H:3 * H, lo_cols] = np.asarray(self.W2l).T     # K[oy, ox]
        b2s[0, diag_cols] = np.asarray(self.b2d)
        b2s[0, up_cols] = np.asarray(self.b2u)
        b2s[0, lo_cols] = np.asarray(self.b2l)

        # per-row reduction: R[i*D + j, i] = 1  -> out[b, i] = sum_j (...)[b, i*D+j]
        # 0/1 values are exact in bf16 -> half the DMA for this constant.
        r = np.zeros((DD_pad, Do_pad), np.float32)
        ii = np.repeat(np.arange(D), D)
        jj = np.tile(np.arange(D), D)
        r[ii * D + jj, ii] = 1.0

        self._w1 = jnp.asarray(w1)
        self._b1 = jnp.asarray(b1)
        self._w2s = jnp.asarray(w2s)
        self._b2s = jnp.asarray(b2s)
        self._r = jnp.asarray(r, dtype=jnp.bfloat16)

        # compile once; weights are closed over as constants
        self._forward = jax.jit(self._forward_impl)

    # -------------------------------------------------------------------- #
    def _forward_impl(self, x, pars):
        D = self.latent_dim
        B = x.shape[0]
        # batch grid: up to 128 rows per block, axis marked "parallel"
        block_b = min(128, _ru(B, SUBLANE))
        B_pad = _ru(B, block_b)
        grid_b = B_pad // block_b

        # sublane/lane zero-padding of the runtime inputs
        pars_p = jnp.zeros((B_pad, self._P_pad), jnp.float32)
        pars_p = pars_p.at[:B, :self.par_dim].set(pars.astype(jnp.float32))
        # lane-tiled x: xt[b, i*D + j] = x[b, j]   (replaces the old T matmul)
        xt = jnp.tile(x.astype(jnp.float32), (1, D))            # (B, D*D)
        xt_p = jnp.zeros((B_pad, self._DD_pad), jnp.float32)
        xt_p = xt_p.at[:B, :self._DD].set(xt)

        in_specs = [
            pl.BlockSpec((block_b, self._P_pad), lambda i: (i, 0)),   # pars
            pl.BlockSpec((block_b, self._DD_pad), lambda i: (i, 0)),  # xt
            pl.BlockSpec(self._w1.shape, lambda i: (0, 0)),
            pl.BlockSpec(self._b1.shape, lambda i: (0, 0)),
            pl.BlockSpec(self._w2s.shape, lambda i: (0, 0)),
            pl.BlockSpec(self._b2s.shape, lambda i: (0, 0)),
            pl.BlockSpec(self._r.shape, lambda i: (0, 0)),
        ]
        out_specs = (pl.BlockSpec((block_b, self._DD_pad), lambda i: (i, 0)),
                     pl.BlockSpec((block_b, self._Do_pad), lambda i: (i, 0)))

        flops = 2 * B_pad * (self._P_pad * self._HP
                             + self._HP * self._DD_pad
                             + self._DD_pad * self._Do_pad) \
            + 3 * B_pad * self._DD_pad
        const_bytes = (self._w1.size + self._b1.size
                       + self._w2s.size + self._b2s.size) * 4 + self._r.size * 2
        bytes_accessed = const_bytes + 4 * (pars_p.size + xt_p.size
                                            + B_pad * self._DD_pad
                                            + B_pad * self._Do_pad)

        k_flat, out = pl.pallas_call(
            _koopman_kernel,
            grid=(grid_b,),
            in_specs=in_specs,
            out_specs=out_specs,
            out_shape=(jax.ShapeDtypeStruct((B_pad, self._DD_pad), jnp.float32),
                       jax.ShapeDtypeStruct((B_pad, self._Do_pad), jnp.float32)),
            compiler_params=pltpu.CompilerParams(
                dimension_semantics=("parallel",)),
            cost_estimate=pl.CostEstimate(flops=int(flops),
                                          transcendentals=0,
                                          bytes_accessed=int(bytes_accessed)),
        )(pars_p, xt_p, self._w1, self._b1, self._w2s, self._b2s, self._r)

        # Keep the PyTorch return contract (B, D, D); downstream consumers that
        # can take the lane-dense flat (B_pad, DD_pad) slab should use k_flat
        # directly to avoid this relayout.
        koopman = k_flat[:B, :self._DD].reshape(B, D, D)
        out = out[:B, :D]
        return out, koopman

    def __call__(self, x, pars):
        return self._forward(x, pars)


# ------------------------- pure-JAX reference check ------------------------ #
def _reference_forward(model, x, pars):
    def mlp(p, W1, b1, W2, b2):
        h = p @ W1.T + b1
        h = jnp.where(h > 0, h, LEAKY_SLOPE * h)
        return h @ W2.T + b2

    diag = mlp(pars, model.W1d, model.b1d, model.W2d, model.b2d)
    up = mlp(pars, model.W1u, model.b1u, model.W2u, model.b2u)
    lo = mlp(pars, model.W1l, model.b1l, model.W2l, model.b2l)
    D = model.latent_dim
    B = x.shape[0]
    off_x = np.concatenate([np.arange(0, D - i) for i in range(1, model.num_diags)])
    off_y = np.concatenate([np.arange(i, D) for i in range(1, model.num_diags)])
    K = jnp.zeros((B, D, D), jnp.float32)
    K = K.at[:, np.arange(D), np.arange(D)].set(diag)
    K = K.at[:, off_x, off_y].set(up)
    K = K.at[:, off_y, off_x].set(lo)
    out = jnp.einsum('bij,bj->bi', K, x)
    return out, K


if __name__ == "__main__":
    key = jax.random.PRNGKey(0)
    mkey, xkey, pkey = jax.random.split(key, 3)

    latent_dim, par_dim, hidden_neurons, num_diags, batch = 32, 4, 32, 3, 4
    model = PallasKoopman(mkey, latent_dim, par_dim, hidden_neurons, num_diags)

    x = jax.random.normal(xkey, (batch, latent_dim), jnp.float32)
    pars = jax.random.normal(pkey, (batch, par_dim), jnp.float32)

    out, K = model(x, pars)
    jax.block_until_ready((out, K))

    assert out.shape == (batch, latent_dim), out.shape
    assert K.shape == (batch, latent_dim, latent_dim), K.shape
    assert bool(jnp.all(jnp.isfinite(out))) and bool(jnp.all(jnp.isfinite(K)))

    ref_out, ref_K = _reference_forward(model, x, pars)
    assert bool(jnp.allclose(K, ref_K, atol=1e-4, rtol=1e-4))
    assert bool(jnp.allclose(out, ref_out, atol=1e-4, rtol=1e-4))

    print("KERNEL_OK")
</pallas_src>

<mosaic_0001>
module attributes {stable_mosaic.version = 11 : i64} {
  func.func @_koopman_kernel(%arg0: i32, %arg1: memref<8x128xf32, #tpu.memory_space<vmem>>, %arg2: memref<8x1024xf32, #tpu.memory_space<vmem>>, %arg3: memref<128x128xf32, #tpu.memory_space<vmem>>, %arg4: memref<1x128xf32, #tpu.memory_space<vmem>>, %arg5: memref<128x1024xf32, #tpu.memory_space<vmem>>, %arg6: memref<1x1024xf32, #tpu.memory_space<vmem>>, %arg7: memref<1024x128xbf16, #tpu.memory_space<vmem>>, %arg8: memref<8x1024xf32, #tpu.memory_space<vmem>>, %arg9: memref<8x128xf32, #tpu.memory_space<vmem>>) attributes {dimension_semantics = [#tpu.dimension_semantics<parallel>], iteration_bounds = array<i64: 1>, scalar_prefetch = 0 : i64, scratch_operands = 0 : i64, tpu.core_type = #tpu.core_type<tc>, window_params = [{transform_indices = @transform_0, window_bounds = array<i64: 8, 128>}, {transform_indices = @transform_1, window_bounds = array<i64: 8, 1024>}, {pipeline_mode = #tpu.pipeline_mode<synchronous>, transform_indices = @transform_2, window_bounds = array<i64: 128, 128>}, {pipeline_mode = #tpu.pipeline_mode<synchronous>, transform_indices = @transform_3, window_bounds = array<i64: 1, 128>}, {pipeline_mode = #tpu.pipeline_mode<synchronous>, transform_indices = @transform_4, window_bounds = array<i64: 128, 1024>}, {pipeline_mode = #tpu.pipeline_mode<synchronous>, transform_indices = @transform_5, window_bounds = array<i64: 1, 1024>}, {pipeline_mode = #tpu.pipeline_mode<synchronous>, transform_indices = @transform_6, window_bounds = array<i64: 1024, 128>}, {transform_indices = @transform_7, window_bounds = array<i64: 8, 1024>}, {transform_indices = @transform_8, window_bounds = array<i64: 8, 128>}]} {
    %c0 = arith.constant 0 : index
    %c0_0 = arith.constant 0 : index
    %0 = vector.load %arg1[%c0, %c0_0] : memref<8x128xf32, #tpu.memory_space<vmem>>, vector<8x128xf32>
    %c0_1 = arith.constant 0 : index
    %c0_2 = arith.constant 0 : index
    %1 = vector.load %arg3[%c0_1, %c0_2] : memref<128x128xf32, #tpu.memory_space<vmem>>, vector<128x128xf32>
    %cst = arith.constant dense<0.000000e+00> : vector<8x128xf32>
    %2 = tpu.matmul %0, %1, %cst {dimension_numbers = #tpu.dot_dimension_numbers<[1], [0], [0], [1], [0, 0, 1, 1], [], []>} : vector<8x128xf32>, vector<128x128xf32>, vector<8x128xf32> -> vector<8x128xf32>
    %c0_3 = arith.constant 0 : index
    %c0_4 = arith.constant 0 : index
    %3 = vector.load %arg4[%c0_3, %c0_4] : memref<1x128xf32, #tpu.memory_space<vmem>>, vector<1x128xf32>
    %4 = vector.broadcast %3 : vector<1x128xf32> to vector<8x128xf32>
    %5 = arith.addf %2, %4 : vector<8x128xf32>
    %cst_5 = arith.constant 0.000000e+00 : f32
    %6 = vector.broadcast %cst_5 : f32 to vector<8x128xf32>
    %7 = arith.cmpf ogt, %5, %6 : vector<8x128xf32>
    %cst_6 = arith.constant 0.00999999977 : f32
    %8 = vector.broadcast %cst_6 : f32 to vector<8x128xf32>
    %9 = arith.mulf %8, %5 : vector<8x128xf32>
    %10 = arith.select %7, %5, %9 : vector<8x128xi1>, vector<8x128xf32>
    %c0_7 = arith.constant 0 : index
    %c0_8 = arith.constant 0 : index
    %11 = vector.load %arg5[%c0_7, %c0_8] : memref<128x1024xf32, #tpu.memory_space<vmem>>, vector<128x1024xf32>
    %cst_9 = arith.constant dense<0.000000e+00> : vector<8x1024xf32>
    %12 = tpu.matmul %10, %11, %cst_9 {dimension_numbers = #tpu.dot_dimension_numbers<[1], [0], [0], [1], [0, 0, 1, 1], [], []>} : vector<8x128xf32>, vector<128x1024xf32>, vector<8x1024xf32> -> vector<8x1024xf32>
    %c0_10 = arith.constant 0 : index
    %c0_11 = arith.constant 0 : index
    %13 = vector.load %arg6[%c0_10, %c0_11] : memref<1x1024xf32, #tpu.memory_space<vmem>>, vector<1x1024xf32>
    %14 = vector.broadcast %13 : vector<1x1024xf32> to vector<8x1024xf32>
    %15 = arith.addf %12, %14 : vector<8x1024xf32>
    %c0_12 = arith.constant 0 : index
    %c0_13 = arith.constant 0 : index
    %16 = vector.load %arg2[%c0_12, %c0_13] : memref<8x1024xf32, #tpu.memory_space<vmem>>, vector<8x1024xf32>
    %17 = arith.mulf %15, %16 : vector<8x1024xf32>
    %c0_14 = arith.constant 0 : index
    %c0_15 = arith.constant 0 : index
    %18 = vector.load %arg7[%c0_14, %c0_15] : memref<1024x128xbf16, #tpu.memory_space<vmem>>, vector<1024x128xbf16>
    %19 = arith.extf %18 : vector<1024x128xbf16> to vector<1024x128xf32>
    %cst_16 = arith.constant dense<0.000000e+00> : vector<8x128xf32>
    %20 = tpu.matmul %17, %19, %cst_16 {dimension_numbers = #tpu.dot_dimension_numbers<[1], [0], [0], [1], [0, 0, 1, 1], [], []>} : vector<8x1024xf32>, vector<1024x128xf32>, vector<8x128xf32> -> vector<8x128xf32>
    %c0_17 = arith.constant 0 : index
    %c0_18 = arith.constant 0 : index
    %21 = vector.load %arg8[%c0_17, %c0_18] : memref<8x1024xf32, #tpu.memory_space<vmem>>, vector<8x1024xf32>
    tpu.vector_store %arg8[%c0_17, %c0_18], %15 {strides = array<i32>} : memref<8x1024xf32, #tpu.memory_space<vmem>>, vector<8x1024xf32>,
    %c0_19 = arith.constant 0 : index
    %c0_20 = arith.constant 0 : index
    %22 = vector.load %arg9[%c0_19, %c0_20] : memref<8x128xf32, #tpu.memory_space<vmem>>, vector<8x128xf32>
    tpu.vector_store %arg9[%c0_19, %c0_20], %20 {strides = array<i32>} : memref<8x128xf32, #tpu.memory_space<vmem>>, vector<8x128xf32>,
    return
  }
  func.func @transform_0(%arg0: i32) -> (i32, i32) {
    %c0_i32 = arith.constant 0 : i32
    %c0_i32_0 = arith.constant 0 : i32
    return %arg0, %c0_i32 : i32, i32
  }
  func.func @transform_1(%arg0: i32) -> (i32, i32) {
    %c0_i32 = arith.constant 0 : i32
    %c0_i32_0 = arith.constant 0 : i32
    return %arg0, %c0_i32 : i32, i32
  }
  func.func @transform_2(%arg0: i32) -> (i32, i32) {
    %c0_i32 = arith.constant 0 : i32
    %c0_i32_0 = arith.constant 0 : i32
    %c0_i32_1 = arith.constant 0 : i32
    return %c0_i32, %c0_i32_0 : i32, i32
  }
  func.func @transform_3(%arg0: i32) -> (i32, i32) {
    %c0_i32 = arith.constant 0 : i32
    %c0_i32_0 = arith.constant 0 : i32
    %c0_i32_1 = arith.constant 0 : i32
    return %c0_i32, %c0_i32_0 : i32, i32
  }
  func.func @transform_4(%arg0: i32) -> (i32, i32) {
    %c0_i32 = arith.constant 0 : i32
    %c0_i32_0 = arith.constant 0 : i32
    %c0_i32_1 = arith.constant 0 : i32
    return %c0_i32, %c0_i32_0 : i32, i32
  }
  func.func @transform_5(%arg0: i32) -> (i32, i32) {
    %c0_i32 = arith.constant 0 : i32
    %c0_i32_0 = arith.constant 0 : i32
    %c0_i32_1 = arith.constant 0 : i32
    return %c0_i32, %c0_i32_0 : i32, i32
  }
  func.func @transform_6(%arg0: i32) -> (i32, i32) {
    %c0_i32 = arith.constant 0 : i32
    %c0_i32_0 = arith.constant 0 : i32
    %c0_i32_1 = arith.constant 0 : i32
    return %c0_i32, %c0_i32_0 : i32, i32
  }
  func.func @transform_7(%arg0: i32) -> (i32, i32) {
    %c0_i32 = arith.constant 0 : i32
    %c0_i32_0 = arith.constant 0 : i32
    return %arg0, %c0_i32 : i32, i32
  }
  func.func @transform_8(%arg0: i32) -> (i32, i32) {
    %c0_i32 = arith.constant 0 : i32
    %c0_i32_0 = arith.constant 0 : i32
    return %arg0, %c0_i32 : i32, i32
  }
}

</mosaic_0001>

<llo_original>
// kernel: _forward_impl.1
$region0: #{_forward_impl.1}
  #allocation0 [shape = 'u32[]', space=smem, size = 0x4, offset = 0x4, fixed_abs, tag = 'smem constant byte address 0x4 - core index']
  #allocation1 [shape = 'u32[144,128]{1,0:T(1,128)}', space=vmem, size = 0x12000, scoped, tag = 'internal scratch']
  %s0 = inlined_call_operand.vmem [shape: f32[8,128], index: 0, kind: input, shape index: {}]
  %s1 = inlined_call_operand.vmem [shape: f32[8,1024], index: 1, kind: input, shape index: {}]
  %s2 = inlined_call_operand.vmem [shape: f32[128,128], index: 2, kind: input, shape index: {}]
  %s3 = inlined_call_operand.vmem [shape: f32[1,128], index: 3, kind: input, shape index: {}]
  %s4 = inlined_call_operand.hbm [shape: f32[128,1024], index: 4, kind: input, shape index: {}]
  %s5 = inlined_call_operand.vmem [shape: f32[1,1024], index: 5, kind: input, shape index: {}]
  %s6 = inlined_call_operand.hbm [shape: bf16[1024,128], index: 6, kind: input, shape index: {}]
  %s7 = inlined_call_operand.vmem [shape: f32[8,1024], index: 7, kind: output, shape index: {0}]
  %s8 = inlined_call_operand.vmem [shape: f32[8,128], index: 8, kind: output, shape index: {1}]
  %9 = xla_tuple %s7, %s8
  %s10 = sld [smem:[#allocation0]]
  $region54: #{_forward_impl.1} parent=0
    _
  %s12 = ssub.s32 1, %s10
  %s13 = scalar_select 0, %s12, %s10
  $region1: #{_forward_impl.1} parent=0
    #allocation2 [shape = 'u8[524288]{0}', space=vmem, size = 0x80000, scoped, tag = 'input window, operand 4, single buffered']
    #allocation3 [shape = 's32[1]{0}', space=sflag, size = 0x4, scoped, tag = 'scoped memory for _forward_impl.1']
    #allocation4 [shape = 'u8[262144]{0}', space=vmem, size = 0x40000, scoped, tag = 'input window, operand 6, single buffered']
    #allocation5 [shape = 's32[1]{0}', space=sflag, size = 0x4, scoped, tag = 'scoped memory for _forward_impl.1']
    %14 = vsyncpa [#allocation3], 0
    %15 = vsyncpa [#allocation5], 0
    // Predicated region
    $region2: #{_forward_impl.1} parent=1 // pred_check
      _
    $region3: #{_forward_impl.1} parent=1 // pred_check_branch
      %17 = sbr.rel (0) target = $region5
    $region4: #{_forward_impl.1} parent=1 // pred_region
      _
    $region5: #{_forward_impl.1} parent=1 // pred_fallthru
      _
    // Predicated region
    $region6: #{_forward_impl.1} parent=1 // pred_check
      _
    $region7: #{_forward_impl.1} parent=1 // pred_check_branch
      %19 = sbr.rel (0) target = $region9
    $region8: #{_forward_impl.1} parent=1 // pred_region
      _
    $region9: #{_forward_impl.1} parent=1 // pred_fallthru
      _
    // Predicated region
    $region10: #{_forward_impl.1} parent=1 // pred_check
      _
    $region11: #{_forward_impl.1} parent=1 // pred_check_branch
      %21 = sbr.rel (0) target = $region13
    $region12: #{_forward_impl.1} parent=1 // pred_region
      _
    $region13: #{_forward_impl.1} parent=1 // pred_fallthru
      _
    // Predicated region
    $region14: #{_forward_impl.1} parent=1 // pred_check
      _
    $region15: #{_forward_impl.1} parent=1 // pred_check_branch
      %23 = sbr.rel (0) target = $region17
    $region16: #{_forward_impl.1} parent=1 // pred_region
      _
    $region17: #{_forward_impl.1} parent=1 // pred_fallthru
      _
    // Predicated region
    $region18: #{_forward_impl.1} parent=1 // pred_check
      _
    $region19: #{_forward_impl.1} parent=1 // pred_check_branch
      %25 = sbr.rel (0) target = $region21
    $region20: #{_forward_impl.1} parent=1 // pred_region
      %s27 = ssub.s32 16384, 16384
      %28 = vsyncadd [#allocation3], %s27
      %s29 = sshll.u32 [#allocation2], 4
      %s30 = int_to_ptr.vmem [resolvable:$true] %s29
      %35 = dma.hbm_to_vmem [thread:$0]  %s4, 16384, %s30, [#allocation3], 1024, 1024, 64
    $region21: #{_forward_impl.1} parent=1 // pred_fallthru
      _
    // Predicated region
    $region22: #{_forward_impl.1} parent=1 // pred_check
      _
    $region23: #{_forward_impl.1} parent=1 // pred_check_branch
      %37 = sbr.rel (0) target = $region25
    $region24: #{_forward_impl.1} parent=1 // pred_region
      _
    $region25: #{_forward_impl.1} parent=1 // pred_fallthru
      _
    // Predicated region
    $region26: #{_forward_impl.1} parent=1 // pred_check
      _
    $region27: #{_forward_impl.1} parent=1 // pred_check_branch
      %39 = sbr.rel (0) target = $region29
    $region28: #{_forward_impl.1} parent=1 // pred_region
      %s41 = ssub.s32 8192, 8192
      %42 = vsyncadd [#allocation5], %s41
      %s43 = sshll.u32 [#allocation4], 4
      %s44 = int_to_ptr.vmem [resolvable:$true] %s43
      %49 = dma.hbm_to_vmem [thread:$0]  %s6, 8192, %s44, [#allocation5], 64, 64, 4
    $region29: #{_forward_impl.1} parent=1 // pred_fallthru
      _
    // Predicated region
    $region30: #{_forward_impl.1} parent=1 // pred_check
      _
    $region31: #{_forward_impl.1} parent=1 // pred_check_branch
      %51 = sbr.rel (0) target = $region33
    $region32: #{_forward_impl.1} parent=1 // pred_region
      %52 = dma.done [#allocation3], 16384
    $region33: #{_forward_impl.1} parent=1 // pred_fallthru
      _
    // Predicated region
    $region34: #{_forward_impl.1} parent=1 // pred_check
      _
    $region35: #{_forward_impl.1} parent=1 // pred_check_branch
      %54 = sbr.rel (0) target = $region37
    $region36: #{_forward_impl.1} parent=1 // pred_region
      %55 = dma.done [#allocation5], 8192
    $region37: #{_forward_impl.1} parent=1 // pred_fallthru
      _
    %v56 = vld [vmem:[%s0] sm:$0xff]
    %v57 = vld [vmem:[%s2] sm:$0xff]
    %v58 = vld [vmem:[%s2 + $0x8] sm:$0xff]
    %v59 = vld [vmem:[%s2 + $0x10] sm:$0xff]
    %v60 = vld [vmem:[%s2 + $0x18] sm:$0xff]
    %v61 = vld [vmem:[%s2 + $0x20] sm:$0xff]
    %v62 = vld [vmem:[%s2 + $0x28] sm:$0xff]
    %v63 = vld [vmem:[%s2 + $0x30] sm:$0xff]
    %v64 = vld [vmem:[%s2 + $0x38] sm:$0xff]
    %v65 = vld [vmem:[%s2 + $0x40] sm:$0xff]
    %v66 = vld [vmem:[%s2 + $0x48] sm:$0xff]
    %v67 = vld [vmem:[%s2 + $0x50] sm:$0xff]
    %v68 = vld [vmem:[%s2 + $0x58] sm:$0xff]
    %v69 = vld [vmem:[%s2 + $0x60] sm:$0xff]
    %v70 = vld [vmem:[%s2 + $0x68] sm:$0xff]
    %v71 = vld [vmem:[%s2 + $0x70] sm:$0xff]
    %v72 = vld [vmem:[%s2 + $0x78] sm:$0xff]
    %v73 = vld [vmem:[%s3] sm:$0x1]
    %v75 = vlaneseq
    %v76 = vshrl.u32 %v75, 7
    %v77 = vsub.s32 0, %v76
    %v78 = vrot.slane %v73, %v77
    %80 = vmatprep.subr.mxu0 0.0
    %81 = vmatpush1.msra.mxu0 %v57
    %82 = vmatprep.subr.mxu0 0.0
    %83 = vmatpush1.msra.mxu0 %v58
    %84 = vmatprep.subr.mxu0 0.0
    %85 = vmatpush1.msra.mxu0 %v59
    %86 = vmatprep.subr.mxu0 0.0
    %87 = vmatpush1.msra.mxu0 %v60
    %88 = vmatprep.subr.mxu0 0.0
    %89 = vmatpush1.msra.mxu0 %v61
    %90 = vmatprep.subr.mxu0 0.0
    %91 = vmatpush1.msra.mxu0 %v62
    %92 = vmatprep.subr.mxu0 0.0
    %93 = vmatpush1.msra.mxu0 %v63
    %94 = vmatprep.subr.mxu0 0.0
    %95 = vmatpush1.msra.mxu0 %v64
    %96 = vmatprep.subr.mxu0 0.0
    %97 = vmatpush1.msra.mxu0 %v65
    %98 = vmatprep.subr.mxu0 0.0
    %99 = vmatpush1.msra.mxu0 %v66
    %100 = vmatprep.subr.mxu0 0.0
    %101 = vmatpush1.msra.mxu0 %v67
    %102 = vmatprep.subr.mxu0 0.0
    %103 = vmatpush1.msra.mxu0 %v68
    %104 = vmatprep.subr.mxu0 0.0
    %105 = vmatpush1.msra.mxu0 %v69
    %106 = vmatprep.subr.mxu0 0.0
    %107 = vmatpush1.msra.mxu0 %v70
    %108 = vmatprep.subr.mxu0 0.0
    %109 = vmatpush1.msra.mxu0 %v71
    %110 = vmatprep.subr.mxu0 0.0
    %111 = vmatpush1.msra.mxu0 %v72
    %112 = vmatprep.subr.mxu0 0.0
    %113 = vmatpush1.msra.mxu0 0.0
    %114 = vmatprep.subr.mxu0 0.0
    %115 = vmatpush1.msra.mxu0 0.0
    %116 = vmatprep.subr.mxu0 0.0
    %117 = vmatpush1.msra.mxu0 0.0
    %118 = vmatprep.subr.mxu0 0.0
    %119 = vmatpush1.msra.mxu0 0.0
    %120 = vmatprep.subr.mxu0 0.0
    %121 = vmatpush1.msra.mxu0 0.0
    %122 = vmatprep.subr.mxu0 0.0
    %123 = vmatpush1.msra.mxu0 0.0
    %124 = vmatprep.subr.mxu0 0.0
    %125 = vmatpush1.msra.mxu0 0.0
    %126 = vmatprep.subr.mxu0 0.0
    %127 = vmatpush1.msra.mxu0 0.0
    %128 = vmatprep.subr.mxu0 0.0
    %129 = vmatpush1.msra.mxu0 0.0
    %130 = vmatprep.subr.mxu0 0.0
    %131 = vmatpush1.msra.mxu0 0.0
    %132 = vmatprep.subr.mxu0 0.0
    %133 = vmatpush1.msra.mxu0 0.0
    %134 = vmatprep.subr.mxu0 0.0
    %135 = vmatpush1.msra.mxu0 0.0
    %136 = vmatprep.subr.mxu0 0.0
    %137 = vmatpush1.msra.mxu0 0.0
    %138 = vmatprep.subr.mxu0 0.0
    %139 = vmatpush1.msra.mxu0 0.0
    %140 = vmatprep.subr.mxu0 0.0
    %141 = vmatpush1.msra.mxu0 0.0
    %142 = vmatprep.subr.mxu0 0.0
    %143 = vmatpush1.msra.mxu0 0.0
    %144 = vmatprep.mubr.f32.mxu0 0.0
    %145 = vmatmul.mubr.f32.gmra.mrb[0].mxu0 %v56
    %v146 = vpop.f32.mrb[0].mxu0
    %v147 = vadd.f32 %v78, %v146
    %v148 = vpop.f32.mrb[0].mxu0
    %149 = vdwg.mxu0
    %vm150 = vcmp.gt.f32.partialorder %v147, 0.0
    %v151 = vmul.f32 %v147, 0.01
    %v152 = vsel %vm150, %v147, %v151
    %v153 = vld [vmem:[#allocation2] sm:$0xff]
    %v154 = vld [vmem:[#allocation2 + $0x8] sm:$0xff]
    %v155 = vld [vmem:[#allocation2 + $0x10] sm:$0xff]
    %v156 = vld [vmem:[#allocation2 + $0x18] sm:$0xff]
    %v157 = vld [vmem:[#allocation2 + $0x20] sm:$0xff]
    %v158 = vld [vmem:[#allocation2 + $0x28] sm:$0xff]
    %v159 = vld [vmem:[#allocation2 + $0x30] sm:$0xff]
    %v160 = vld [vmem:[#allocation2 + $0x38] sm:$0xff]
    %v161 = vld [vmem:[#allocation2 + $0x40] sm:$0xff]
    %v162 = vld [vmem:[#allocation2 + $0x48] sm:$0xff]
    %v163 = vld [vmem:[#allocation2 + $0x50] sm:$0xff]
    %v164 = vld [vmem:[#allocation2 + $0x58] sm:$0xff]
    %v165 = vld [vmem:[#allocation2 + $0x60] sm:$0xff]
    %v166 = vld [vmem:[#allocation2 + $0x68] sm:$0xff]
    %v167 = vld [vmem:[#allocation2 + $0x70] sm:$0xff]
    %v168 = vld [vmem:[#allocation2 + $0x78] sm:$0xff]
    %v169 = vld [vmem:[#allocation2 + $0x80] sm:$0xff]
    %v170 = vld [vmem:[#allocation2 + $0x88] sm:$0xff]
    %v171 = vld [vmem:[#allocation2 + $0x90] sm:$0xff]
    %v172 = vld [vmem:[#allocation2 + $0x98] sm:$0xff]
    %v173 = vld [vmem:[#allocation2 + $0xa0] sm:$0xff]
    %v174 = vld [vmem:[#allocation2 + $0xa8] sm:$0xff]
    %v175 = vld [vmem:[#allocation2 + $0xb0] sm:$0xff]
    %v176 = vld [vmem:[#allocation2 + $0xb8] sm:$0xff]
    %v177 = vld [vmem:[#allocation2 + $0xc0] sm:$0xff]
    %v178 = vld [vmem:[#allocation2 + $0xc8] sm:$0xff]
    %v179 = vld [vmem:[#allocation2 + $0xd0] sm:$0xff]
    %v180 = vld [vmem:[#allocation2 + $0xd8] sm:$0xff]
    %v181 = vld [vmem:[#allocation2 + $0xe0] sm:$0xff]
    %v182 = vld [vmem:[#allocation2 + $0xe8] sm:$0xff]
    %v183 = vld [vmem:[#allocation2 + $0xf0] sm:$0xff]
    %v184 = vld [vmem:[#allocation2 + $0xf8] sm:$0xff]
    %v185 = vld [vmem:[#allocation2 + $0x100] sm:$0xff]
    %v186 = vld [vmem:[#allocation2 + $0x108] sm:$0xff]
    %v187 = vld [vmem:[#allocation2 + $0x110] sm:$0xff]
    %v188 = vld [vmem:[#allocation2 + $0x118] sm:$0xff]
    %v189 = vld [vmem:[#allocation2 + $0x120] sm:$0xff]
    %v190 = vld [vmem:[#allocation2 + $0x128] sm:$0xff]
    %v191 = vld [vmem:[#allocation2 + $0x130] sm:$0xff]
    %v192 = vld [vmem:[#allocation2 + $0x138] sm:$0xff]
    %v193 = vld [vmem:[#allocation2 + $0x140] sm:$0xff]
    %v194 = vld [vmem:[#allocation2 + $0x148] sm:$0xff]
    %v195 = vld [vmem:[#allocation2 + $0x150] sm:$0xff]
    %v196 = vld [vmem:[#allocation2 + $0x158] sm:$0xff]
    %v197 = vld [vmem:[#allocation2 + $0x160] sm:$0xff]
    %v198 = vld [vmem:[#allocation2 + $0x168] sm:$0xff]
    %v199 = vld [vmem:[#allocation2 + $0x170] sm:$0xff]
    %v200 = vld [vmem:[#allocation2 + $0x178] sm:$0xff]
    %v201 = vld [vmem:[#allocation2 + $0x180] sm:$0xff]
    %v202 = vld [vmem:[#allocation2 + $0x188] sm:$0xff]
    %v203 = vld [vmem:[#allocation2 + $0x190] sm:$0xff]
    %v204 = vld [vmem:[#allocation2 + $0x198] sm:$0xff]
    %v205 = vld [vmem:[#allocation2 + $0x1a0] sm:$0xff]
    %v206 = vld [vmem:[#allocation2 + $0x1a8] sm:$0xff]
    %v207 = vld [vmem:[#allocation2 + $0x1b0] sm:$0xff]
    %v208 = vld [vmem:[#allocation2 + $0x1b8] sm:$0xff]
    %v209 = vld [vmem:[#allocation2 + $0x1c0] sm:$0xff]
    %v210 = vld [vmem:[#allocation2 + $0x1c8] sm:$0xff]
    %v211 = vld [vmem:[#allocation2 + $0x1d0] sm:$0xff]
    %v212 = vld [vmem:[#allocation2 + $0x1d8] sm:$0xff]
    %v213 = vld [vmem:[#allocation2 + $0x1e0] sm:$0xff]
    %v214 = vld [vmem:[#allocation2 + $0x1e8] sm:$0xff]
    %v215 = vld [vmem:[#allocation2 + $0x1f0] sm:$0xff]
    %v216 = vld [vmem:[#allocation2 + $0x1f8] sm:$0xff]
    %v217 = vld [vmem:[#allocation2 + $0x200] sm:$0xff]
    %v218 = vld [vmem:[#allocation2 + $0x208] sm:$0xff]
    %v219 = vld [vmem:[#allocation2 + $0x210] sm:$0xff]
    %v220 = vld [vmem:[#allocation2 + $0x218] sm:$0xff]
    %v221 = vld [vmem:[#allocation2 + $0x220] sm:$0xff]
    %v222 = vld [vmem:[#allocation2 + $0x228] sm:$0xff]
    %v223 = vld [vmem:[#allocation2 + $0x230] sm:$0xff]
    %v224 = vld [vmem:[#allocation2 + $0x238] sm:$0xff]
    %v225 = vld [vmem:[#allocation2 + $0x240] sm:$0xff]
    %v226 = vld [vmem:[#allocation2 + $0x248] sm:$0xff]
    %v227 = vld [vmem:[#allocation2 + $0x250] sm:$0xff]
    %v228 = vld [vmem:[#allocation2 + $0x258] sm:$0xff]
    %v229 = vld [vmem:[#allocation2 + $0x260] sm:$0xff]
    %v230 = vld [vmem:[#allocation2 + $0x268] sm:$0xff]
    %v231 = vld [vmem:[#allocation2 + $0x270] sm:$0xff]
    %v232 = vld [vmem:[#allocation2 + $0x278] sm:$0xff]
    %v233 = vld [vmem:[#allocation2 + $0x280] sm:$0xff]
    %v234 = vld [vmem:[#allocation2 + $0x288] sm:$0xff]
    %v235 = vld [vmem:[#allocation2 + $0x290] sm:$0xff]
    %v236 = vld [vmem:[#allocation2 + $0x298] sm:$0xff]
    %v237 = vld [vmem:[#allocation2 + $0x2a0] sm:$0xff]
    %v238 = vld [vmem:[#allocation2 + $0x2a8] sm:$0xff]
    %v239 = vld [vmem:[#allocation2 + $0x2b0] sm:$0xff]
    %v240 = vld [vmem:[#allocation2 + $0x2b8] sm:$0xff]
    %v241 = vld [vmem:[#allocation2 + $0x2c0] sm:$0xff]
    %v242 = vld [vmem:[#allocation2 + $0x2c8] sm:$0xff]
    %v243 = vld [vmem:[#allocation2 + $0x2d0] sm:$0xff]
    %v244 = vld [vmem:[#allocation2 + $0x2d8] sm:$0xff]
    %v245 = vld [vmem:[#allocation2 + $0x2e0] sm:$0xff]
    %v246 = vld [vmem:[#allocation2 + $0x2e8] sm:$0xff]
    %v247 = vld [vmem:[#allocation2 + $0x2f0] sm:$0xff]
    %v248 = vld [vmem:[#allocation2 + $0x2f8] sm:$0xff]
    %v249 = vld [vmem:[#allocation2 + $0x300] sm:$0xff]
    %v250 = vld [vmem:[#allocation2 + $0x308] sm:$0xff]
    %v251 = vld [vmem:[#allocation2 + $0x310] sm:$0xff]
    %v252 = vld [vmem:[#allocation2 + $0x318] sm:$0xff]
    %v253 = vld [vmem:[#allocation2 + $0x320] sm:$0xff]
    %v254 = vld [vmem:[#allocation2 + $0x328] sm:$0xff]
    %v255 = vld [vmem:[#allocation2 + $0x330] sm:$0xff]
    %v256 = vld [vmem:[#allocation2 + $0x338] sm:$0xff]
    %v257 = vld [vmem:[#allocation2 + $0x340] sm:$0xff]
    %v258 = vld [vmem:[#allocation2 + $0x348] sm:$0xff]
    %v259 = vld [vmem:[#allocation2 + $0x350] sm:$0xff]
    %v260 = vld [vmem:[#allocation2 + $0x358] sm:$0xff]
    %v261 = vld [vmem:[#allocation2 + $0x360] sm:$0xff]
    %v262 = vld [vmem:[#allocation2 + $0x368] sm:$0xff]
    %v263 = vld [vmem:[#allocation2 + $0x370] sm:$0xff]
    %v264 = vld [vmem:[#allocation2 + $0x378] sm:$0xff]
    %v265 = vld [vmem:[#allocation2 + $0x380] sm:$0xff]
    %v266 = vld [vmem:[#allocation2 + $0x388] sm:$0xff]
    %v267 = vld [vmem:[#allocation2 + $0x390] sm:$0xff]
    %v268 = vld [vmem:[#allocation2 + $0x398] sm:$0xff]
    %v269 = vld [vmem:[#allocation2 + $0x3a0] sm:$0xff]
    %v270 = vld [vmem:[#allocation2 + $0x3a8] sm:$0xff]
    %v271 = vld [vmem:[#allocation2 + $0x3b0] sm:$0xff]
    %v272 = vld [vmem:[#allocation2 + $0x3b8] sm:$0xff]
    %v273 = vld [vmem:[#allocation2 + $0x3c0] sm:$0xff]
    %v274 = vld [vmem:[#allocation2 + $0x3c8] sm:$0xff]
    %v275 = vld [vmem:[#allocation2 + $0x3d0] sm:$0xff]
    %v276 = vld [vmem:[#allocation2 + $0x3d8] sm:$0xff]
    %v277 = vld [vmem:[#allocation2 + $0x3e0] sm:$0xff]
    %v278 = vld [vmem:[#allocation2 + $0x3e8] sm:$0xff]
    %v279 = vld [vmem:[#allocation2 + $0x3f0] sm:$0xff]
    %v280 = vld [vmem:[#allocation2 + $0x3f8] sm:$0xff]
    %v281 = vld [vmem:[%s5] sm:$0xff]
    %v283 = vlaneseq
    %v284 = vshrl.u32 %v283, 7
    %v285 = vsub.s32 0, %v284
    %v286 = vrot.slane %v281, %v285
    %v287 = vlaneseq
    %v288 = vshrl.u32 %v287, 7
    %v289 = vsub.s32 1, %v288
    %v290 = vrot.slane %v281, %v289
    %v291 = vlaneseq
    %v292 = vshrl.u32 %v291, 7
    %v293 = vsub.s32 2, %v292
    %v294 = vrot.slane %v281, %v293
    %v295 = vlaneseq
    %v296 = vshrl.u32 %v295, 7
    %v297 = vsub.s32 3, %v296
    %v298 = vrot.slane %v281, %v297
    %v299 = vlaneseq
    %v300 = vshrl.u32 %v299, 7
    %v301 = vsub.s32 4, %v300
    %v302 = vrot.slane %v281, %v301
    %v303 = vlaneseq
    %v304 = vshrl.u32 %v303, 7
    %v305 = vsub.s32 5, %v304
    %v306 = vrot.slane %v281, %v305
    %v307 = vlaneseq
    %v308 = vshrl.u32 %v307, 7
    %v309 = vsub.s32 6, %v308
    %v310 = vrot.slane %v281, %v309
    %v311 = vlaneseq
    %v312 = vshrl.u32 %v311, 7
    %v313 = vsub.s32 7, %v312
    %v314 = vrot.slane %v281, %v313
    %323 = vmatprep.subr.mxu0 %v154
    %324 = vmatpush1.msra.mxu0 %v153
    %325 = vmatprep.subr.mxu0 %v162
    %326 = vmatpush1.msra.mxu0 %v161
    %327 = vmatprep.subr.mxu0 %v170
    %328 = vmatpush1.msra.mxu0 %v169
    %329 = vmatprep.subr.mxu0 %v178
    %330 = vmatpush1.msra.mxu0 %v177
    %331 = vmatprep.subr.mxu0 %v186
    %332 = vmatpush1.msra.mxu0 %v185
    %333 = vmatprep.subr.mxu0 %v194
    %334 = vmatpush1.msra.mxu0 %v193
    %335 = vmatprep.subr.mxu0 %v202
    %336 = vmatpush1.msra.mxu0 %v201
    %337 = vmatprep.subr.mxu0 %v210
    %338 = vmatpush1.msra.mxu0 %v209
    %339 = vmatprep.subr.mxu0 %v218
    %340 = vmatpush1.msra.mxu0 %v217
    %341 = vmatprep.subr.mxu0 %v226
    %342 = vmatpush1.msra.mxu0 %v225
    %343 = vmatprep.subr.mxu0 %v234
    %344 = vmatpush1.msra.mxu0 %v233
    %345 = vmatprep.subr.mxu0 %v242
    %346 = vmatpush1.msra.mxu0 %v241
    %347 = vmatprep.subr.mxu0 %v250
    %348 = vmatpush1.msra.mxu0 %v249
    %349 = vmatprep.subr.mxu0 %v258
    %350 = vmatpush1.msra.mxu0 %v257
    %351 = vmatprep.subr.mxu0 %v266
    %352 = vmatpush1.msra.mxu0 %v265
    %353 = vmatprep.subr.mxu0 %v274
    %354 = vmatpush1.msra.mxu0 %v273
    %355 = vmatprep.subr.mxu0 0.0
    %356 = vmatpush1.msra.mxu0 0.0
    %357 = vmatprep.subr.mxu0 0.0
    %358 = vmatpush1.msra.mxu0 0.0
    %359 = vmatprep.subr.mxu0 0.0
    %360 = vmatpush1.msra.mxu0 0.0
    %361 = vmatprep.subr.mxu0 0.0
    %362 = vmatpush1.msra.mxu0 0.0
    %363 = vmatprep.subr.mxu0 0.0
    %364 = vmatpush1.msra.mxu0 0.0
    %365 = vmatprep.subr.mxu0 0.0
    %366 = vmatpush1.msra.mxu0 0.0
    %367 = vmatprep.subr.mxu0 0.0
    %368 = vmatpush1.msra.mxu0 0.0
    %369 = vmatprep.subr.mxu0 0.0
    %370 = vmatpush1.msra.mxu0 0.0
    %371 = vmatprep.subr.mxu0 0.0
    %372 = vmatpush1.msra.mxu0 0.0
    %373 = vmatprep.subr.mxu0 0.0
    %374 = vmatpush1.msra.mxu0 0.0
    %375 = vmatprep.subr.mxu0 0.0
    %376 = vmatpush1.msra.mxu0 0.0
    %377 = vmatprep.subr.mxu0 0.0
    %378 = vmatpush1.msra.mxu0 0.0
    %379 = vmatprep.subr.mxu0 0.0
    %380 = vmatpush1.msra.mxu0 0.0
    %381 = vmatprep.subr.mxu0 0.0
    %382 = vmatpush1.msra.mxu0 0.0
    %383 = vmatprep.subr.mxu0 0.0
    %384 = vmatpush1.msra.mxu0 0.0
    %385 = vmatprep.subr.mxu0 0.0
    %386 = vmatpush1.msra.mxu0 0.0
    %387 = vmatprep.mubr.f32.mxu0 0.0
    %388 = vmatmul.mubr.f32.gmra.mrb[0].mxu0 %v152
    %v389 = vpop.f32.mrb[0].mxu0
    %v390 = vadd.f32 %v286, %v389
    %v391 = vpop.f32.mrb[0].mxu0
    %v392 = vadd.f32 %v290, %v391
    %393 = vdwg.mxu0
    %394 = vmatprep.subr.mxu0 %v156
    %395 = vmatpush1.msra.mxu0 %v155
    %396 = vmatprep.subr.mxu0 %v164
    %397 = vmatpush1.msra.mxu0 %v163
    %398 = vmatprep.subr.mxu0 %v172
    %399 = vmatpush1.msra.mxu0 %v171
    %400 = vmatprep.subr.mxu0 %v180
    %401 = vmatpush1.msra.mxu0 %v179
    %402 = vmatprep.subr.mxu0 %v188
    %403 = vmatpush1.msra.mxu0 %v187
    %404 = vmatprep.subr.mxu0 %v196
    %405 = vmatpush1.msra.mxu0 %v195
    %406 = vmatprep.subr.mxu0 %v204
    %407 = vmatpush1.msra.mxu0 %v203
    %408 = vmatprep.subr.mxu0 %v212
    %409 = vmatpush1.msra.mxu0 %v211
    %410 = vmatprep.subr.mxu0 %v220
    %411 = vmatpush1.msra.mxu0 %v219
    %412 = vmatprep.subr.mxu0 %v228
    %413 = vmatpush1.msra.mxu0 %v227
    %414 = vmatprep.subr.mxu0 %v236
    %415 = vmatpush1.msra.mxu0 %v235
    %416 = vmatprep.subr.mxu0 %v244
    %417 = vmatpush1.msra.mxu0 %v243
    %418 = vmatprep.subr.mxu0 %v252
    %419 = vmatpush1.msra.mxu0 %v251
    %420 = vmatprep.subr.mxu0 %v260
    %421 = vmatpush1.msra.mxu0 %v259
    %422 = vmatprep.subr.mxu0 %v268
    %423 = vmatpush1.msra.mxu0 %v267
    %424 = vmatprep.subr.mxu0 %v276
    %425 = vmatpush1.msra.mxu0 %v275
    %426 = vmatprep.subr.mxu0 0.0
    %427 = vmatpush1.msra.mxu0 0.0
    %428 = vmatprep.subr.mxu0 0.0
    %429 = vmatpush1.msra.mxu0 0.0
    %430 = vmatprep.subr.mxu0 0.0
    %431 = vmatpush1.msra.mxu0 0.0
    %432 = vmatprep.subr.mxu0 0.0
    %433 = vmatpush1.msra.mxu0 0.0
    %434 = vmatprep.subr.mxu0 0.0
    %435 = vmatpush1.msra.mxu0 0.0
    %436 = vmatprep.subr.mxu0 0.0
    %437 = vmatpush1.msra.mxu0 0.0
    %438 = vmatprep.subr.mxu0 0.0
    %439 = vmatpush1.msra.mxu0 0.0
    %440 = vmatprep.subr.mxu0 0.0
    %441 = vmatpush1.msra.mxu0 0.0
    %442 = vmatprep.subr.mxu0 0.0
    %443 = vmatpush1.msra.mxu0 0.0
    %444 = vmatprep.subr.mxu0 0.0
    %445 = vmatpush1.msra.mxu0 0.0
    %446 = vmatprep.subr.mxu0 0.0
    %447 = vmatpush1.msra.mxu0 0.0
    %448 = vmatprep.subr.mxu0 0.0
    %449 = vmatpush1.msra.mxu0 0.0
    %450 = vmatprep.subr.mxu0 0.0
    %451 = vmatpush1.msra.mxu0 0.0
    %452 = vmatprep.subr.mxu0 0.0
    %453 = vmatpush1.msra.mxu0 0.0
    %454 = vmatprep.subr.mxu0 0.0
    %455 = vmatpush1.msra.mxu0 0.0
    %456 = vmatprep.subr.mxu0 0.0
    %457 = vmatpush1.msra.mxu0 0.0
    %458 = vmatprep.mubr.f32.mxu0 0.0
    %459 = vmatmul.mubr.f32.gmra.mrb[0].mxu0 %v152
    %v460 = vpop.f32.mrb[0].mxu0
    %v461 = vadd.f32 %v294, %v460
    %v462 = vpop.f32.mrb[0].mxu0
    %v463 = vadd.f32 %v298, %v462
    %464 = vdwg.mxu0
    %465 = vmatprep.subr.mxu0 %v158
    %466 = vmatpush1.msra.mxu0 %v157
    %467 = vmatprep.subr.mxu0 %v166
    %468 = vmatpush1.msra.mxu0 %v165
    %469 = vmatprep.subr.mxu0 %v174
    %470 = vmatpush1.msra.mxu0 %v173
    %471 = vmatprep.subr.mxu0 %v182
    %472 = vmatpush1.msra.mxu0 %v181
    %473 = vmatprep.subr.mxu0 %v190
    %474 = vmatpush1.msra.mxu0 %v189
    %475 = vmatprep.subr.mxu0 %v198
    %476 = vmatpush1.msra.mxu0 %v197
    %477 = vmatprep.subr.mxu0 %v206
    %478 = vmatpush1.msra.mxu0 %v205
    %479 = vmatprep.subr.mxu0 %v214
    %480 = vmatpush1.msra.mxu0 %v213
    %481 = vmatprep.subr.mxu0 %v222
    %482 = vmatpush1.msra.mxu0 %v221
    %483 = vmatprep.subr.mxu0 %v230
    %484 = vmatpush1.msra.mxu0 %v229
    %485 = vmatprep.subr.mxu0 %v238
    %486 = vmatpush1.msra.mxu0 %v237
    %487 = vmatprep.subr.mxu0 %v246
    %488 = vmatpush1.msra.mxu0 %v245
    %489 = vmatprep.subr.mxu0 %v254
    %490 = vmatpush1.msra.mxu0 %v253
    %491 = vmatprep.subr.mxu0 %v262
    %492 = vmatpush1.msra.mxu0 %v261
    %493 = vmatprep.subr.mxu0 %v270
    %494 = vmatpush1.msra.mxu0 %v269
    %495 = vmatprep.subr.mxu0 %v278
    %496 = vmatpush1.msra.mxu0 %v277
    %497 = vmatprep.subr.mxu0 0.0
    %498 = vmatpush1.msra.mxu0 0.0
    %499 = vmatprep.subr.mxu0 0.0
    %500 = vmatpush1.msra.mxu0 0.0
    %501 = vmatprep.subr.mxu0 0.0
    %502 = vmatpush1.msra.mxu0 0.0
    %503 = vmatprep.subr.mxu0 0.0
    %504 = vmatpush1.msra.mxu0 0.0
    %505 = vmatprep.subr.mxu0 0.0
    %506 = vmatpush1.msra.mxu0 0.0
    %507 = vmatprep.subr.mxu0 0.0
    %508 = vmatpush1.msra.mxu0 0.0
    %509 = vmatprep.subr.mxu0 0.0
    %510 = vmatpush1.msra.mxu0 0.0
    %511 = vmatprep.subr.mxu0 0.0
    %512 = vmatpush1.msra.mxu0 0.0
    %513 = vmatprep.subr.mxu0 0.0
    %514 = vmatpush1.msra.mxu0 0.0
    %515 = vmatprep.subr.mxu0 0.0
    %516 = vmatpush1.msra.mxu0 0.0
    %517 = vmatprep.subr.mxu0 0.0
    %518 = vmatpush1.msra.mxu0 0.0
    %519 = vmatprep.subr.mxu0 0.0
    %520 = vmatpush1.msra.mxu0 0.0
    %521 = vmatprep.subr.mxu0 0.0
    %522 = vmatpush1.msra.mxu0 0.0
    %523 = vmatprep.subr.mxu0 0.0
    %524 = vmatpush1.msra.mxu0 0.0
    %525 = vmatprep.subr.mxu0 0.0
    %526 = vmatpush1.msra.mxu0 0.0
    %527 = vmatprep.subr.mxu0 0.0
    %528 = vmatpush1.msra.mxu0 0.0
    %529 = vmatprep.mubr.f32.mxu0 0.0
    %530 = vmatmul.mubr.f32.gmra.mrb[0].mxu0 %v152
    %v531 = vpop.f32.mrb[0].mxu0
    %v532 = vadd.f32 %v302, %v531
    %v533 = vpop.f32.mrb[0].mxu0
    %v534 = vadd.f32 %v306, %v533
    %535 = vdwg.mxu0
    %536 = vmatprep.subr.mxu0 %v160
    %537 = vmatpush1.msra.mxu0 %v159
    %538 = vmatprep.subr.mxu0 %v168
    %539 = vmatpush1.msra.mxu0 %v167
    %540 = vmatprep.subr.mxu0 %v176
    %541 = vmatpush1.msra.mxu0 %v175
    %542 = vmatprep.subr.mxu0 %v184
    %543 = vmatpush1.msra.mxu0 %v183
    %544 = vmatprep.subr.mxu0 %v192
    %545 = vmatpush1.msra.mxu0 %v191
    %546 = vmatprep.subr.mxu0 %v200
    %547 = vmatpush1.msra.mxu0 %v199
    %548 = vmatprep.subr.mxu0 %v208
    %549 = vmatpush1.msra.mxu0 %v207
    %550 = vmatprep.subr.mxu0 %v216
    %551 = vmatpush1.msra.mxu0 %v215
    %552 = vmatprep.subr.mxu0 %v224
    %553 = vmatpush1.msra.mxu0 %v223
    %554 = vmatprep.subr.mxu0 %v232
    %555 = vmatpush1.msra.mxu0 %v231
    %556 = vmatprep.subr.mxu0 %v240
    %557 = vmatpush1.msra.mxu0 %v239
    %558 = vmatprep.subr.mxu0 %v248
    %559 = vmatpush1.msra.mxu0 %v247
    %560 = vmatprep.subr.mxu0 %v256
    %561 = vmatpush1.msra.mxu0 %v255
    %562 = vmatprep.subr.mxu0 %v264
    %563 = vmatpush1.msra.mxu0 %v263
    %564 = vmatprep.subr.mxu0 %v272
    %565 = vmatpush1.msra.mxu0 %v271
    %566 = vmatprep.subr.mxu0 %v280
    %567 = vmatpush1.msra.mxu0 %v279
    %568 = vmatprep.subr.mxu0 0.0
    %569 = vmatpush1.msra.mxu0 0.0
    %570 = vmatprep.subr.mxu0 0.0
    %571 = vmatpush1.msra.mxu0 0.0
    %572 = vmatprep.subr.mxu0 0.0
    %573 = vmatpush1.msra.mxu0 0.0
    %574 = vmatprep.subr.mxu0 0.0
    %575 = vmatpush1.msra.mxu0 0.0
    %576 = vmatprep.subr.mxu0 0.0
    %577 = vmatpush1.msra.mxu0 0.0
    %578 = vmatprep.subr.mxu0 0.0
    %579 = vmatpush1.msra.mxu0 0.0
    %580 = vmatprep.subr.mxu0 0.0
    %581 = vmatpush1.msra.mxu0 0.0
    %582 = vmatprep.subr.mxu0 0.0
    %583 = vmatpush1.msra.mxu0 0.0
    %584 = vmatprep.subr.mxu0 0.0
    %585 = vmatpush1.msra.mxu0 0.0
    %586 = vmatprep.subr.mxu0 0.0
    %587 = vmatpush1.msra.mxu0 0.0
    %588 = vmatprep.subr.mxu0 0.0
    %589 = vmatpush1.msra.mxu0 0.0
    %590 = vmatprep.subr.mxu0 0.0
    %591 = vmatpush1.msra.mxu0 0.0
    %592 = vmatprep.subr.mxu0 0.0
    %593 = vmatpush1.msra.mxu0 0.0
    %594 = vmatprep.subr.mxu0 0.0
    %595 = vmatpush1.msra.mxu0 0.0
    %596 = vmatprep.subr.mxu0 0.0
    %597 = vmatpush1.msra.mxu0 0.0
    %598 = vmatprep.subr.mxu0 0.0
    %599 = vmatpush1.msra.mxu0 0.0
    %600 = vmatprep.mubr.f32.mxu0 0.0
    %601 = vmatmul.mubr.f32.gmra.mrb[0].mxu0 %v152
    %v602 = vpop.f32.mrb[0].mxu0
    %v603 = vadd.f32 %v310, %v602
    %v604 = vpop.f32.mrb[0].mxu0
    %v605 = vadd.f32 %v314, %v604
    %606 = vdwg.mxu0
    %v607 = vld [vmem:[%s1] sm:$0xff]
    %v608 = vld [vmem:[%s1 + $0x8] sm:$0xff]
    %v609 = vld [vmem:[%s1 + $0x10] sm:$0xff]
    %v610 = vld [vmem:[%s1 + $0x18] sm:$0xff]
    %v611 = vld [vmem:[%s1 + $0x20] sm:$0xff]
    %v612 = vld [vmem:[%s1 + $0x28] sm:$0xff]
    %v613 = vld [vmem:[%s1 + $0x30] sm:$0xff]
    %v614 = vld [vmem:[%s1 + $0x38] sm:$0xff]
    %v615 = vmul.f32 %v390, %v607
    %v616 = vmul.f32 %v392, %v608
    %v617 = vmul.f32 %v461, %v609
    %v618 = vmul.f32 %v463, %v610
    %v619 = vmul.f32 %v532, %v611
    %v620 = vmul.f32 %v534, %v612
    %v621 = vmul.f32 %v603, %v613
    %v622 = vmul.f32 %v605, %v614
    %v623 = vld [vmem:[#allocation4] sm:$0xf]
    %v624 = vld [vmem:[#allocation4 + $0x4] sm:$0xf]
    %v625 = vld [vmem:[#allocation4 + $0x8] sm:$0xf]
    %v626 = vld [vmem:[#allocation4 + $0xc] sm:$0xf]
    %v627 = vld [vmem:[#allocation4 + $0x10] sm:$0xf]
    %v628 = vld [vmem:[#allocation4 + $0x14] sm:$0xf]
    %v629 = vld [vmem:[#allocation4 + $0x18] sm:$0xf]
    %v630 = vld [vmem:[#allocation4 + $0x1c] sm:$0xf]
    %v631 = vld [vmem:[#allocation4 + $0x20] sm:$0xf]
    %v632 = vld [vmem:[#allocation4 + $0x24] sm:$0xf]
    %v633 = vld [vmem:[#allocation4 + $0x28] sm:$0xf]
    %v634 = vld [vmem:[#allocation4 + $0x2c] sm:$0xf]
    %v635 = vld [vmem:[#allocation4 + $0x30] sm:$0xf]
    %v636 = vld [vmem:[#allocation4 + $0x34] sm:$0xf]
    %v637 = vld [vmem:[#allocation4 + $0x38] sm:$0xf]
    %v638 = vld [vmem:[#allocation4 + $0x3c] sm:$0xf]
    %v639 = vld [vmem:[#allocation4 + $0x40] sm:$0xf]
    %v640 = vld [vmem:[#allocation4 + $0x44] sm:$0xf]
    %v641 = vld [vmem:[#allocation4 + $0x48] sm:$0xf]
    %v642 = vld [vmem:[#allocation4 + $0x4c] sm:$0xf]
    %v643 = vld [vmem:[#allocation4 + $0x50] sm:$0xf]
    %v644 = vld [vmem:[#allocation4 + $0x54] sm:$0xf]
    %v645 = vld [vmem:[#allocation4 + $0x58] sm:$0xf]
    %v646 = vld [vmem:[#allocation4 + $0x5c] sm:$0xf]
    %v647 = vld [vmem:[#allocation4 + $0x60] sm:$0xf]
    %v648 = vld [vmem:[#allocation4 + $0x64] sm:$0xf]
    %v649 = vld [vmem:[#allocation4 + $0x68] sm:$0xf]
    %v650 = vld [vmem:[#allocation4 + $0x6c] sm:$0xf]
    %v651 = vld [vmem:[#allocation4 + $0x70] sm:$0xf]
    %v652 = vld [vmem:[#allocation4 + $0x74] sm:$0xf]
    %v653 = vld [vmem:[#allocation4 + $0x78] sm:$0xf]
    %v654 = vld [vmem:[#allocation4 + $0x7c] sm:$0xf]
    %v655 = vld [vmem:[#allocation4 + $0x80] sm:$0xf]
    %v656 = vld [vmem:[#allocation4 + $0x84] sm:$0xf]
    %v657 = vld [vmem:[#allocation4 + $0x88] sm:$0xf]
    %v658 = vld [vmem:[#allocation4 + $0x8c] sm:$0xf]
    %v659 = vld [vmem:[#allocation4 + $0x90] sm:$0xf]
    %v660 = vld [vmem:[#allocation4 + $0x94] sm:$0xf]
    %v661 = vld [vmem:[#allocation4 + $0x98] sm:$0xf]
    %v662 = vld [vmem:[#allocation4 + $0x9c] sm:$0xf]
    %v663 = vld [vmem:[#allocation4 + $0xa0] sm:$0xf]
    %v664 = vld [vmem:[#allocation4 + $0xa4] sm:$0xf]
    %v665 = vld [vmem:[#allocation4 + $0xa8] sm:$0xf]
    %v666 = vld [vmem:[#allocation4 + $0xac] sm:$0xf]
    %v667 = vld [vmem:[#allocation4 + $0xb0] sm:$0xf]
    %v668 = vld [vmem:[#allocation4 + $0xb4] sm:$0xf]
    %v669 = vld [vmem:[#allocation4 + $0xb8] sm:$0xf]
    %v670 = vld [vmem:[#allocation4 + $0xbc] sm:$0xf]
    %v671 = vld [vmem:[#allocation4 + $0xc0] sm:$0xf]
    %v672 = vld [vmem:[#allocation4 + $0xc4] sm:$0xf]
    %v673 = vld [vmem:[#allocation4 + $0xc8] sm:$0xf]
    %v674 = vld [vmem:[#allocation4 + $0xcc] sm:$0xf]
    %v675 = vld [vmem:[#allocation4 + $0xd0] sm:$0xf]
    %v676 = vld [vmem:[#allocation4 + $0xd4] sm:$0xf]
    %v677 = vld [vmem:[#allocation4 + $0xd8] sm:$0xf]
    %v678 = vld [vmem:[#allocation4 + $0xdc] sm:$0xf]
    %v679 = vld [vmem:[#allocation4 + $0xe0] sm:$0xf]
    %v680 = vld [vmem:[#allocation4 + $0xe4] sm:$0xf]
    %v681 = vld [vmem:[#allocation4 + $0xe8] sm:$0xf]
    %v682 = vld [vmem:[#allocation4 + $0xec] sm:$0xf]
    %v683 = vld [vmem:[#allocation4 + $0xf0] sm:$0xf]
    %v684 = vld [vmem:[#allocation4 + $0xf4] sm:$0xf]
    %v685 = vld [vmem:[#allocation4 + $0xf8] sm:$0xf]
    %v686 = vld [vmem:[#allocation4 + $0xfc] sm:$0xf]
    %v687 = vld [vmem:[#allocation4 + $0x100] sm:$0xf]
    %v688 = vld [vmem:[#allocation4 + $0x104] sm:$0xf]
    %v689 = vld [vmem:[#allocation4 + $0x108] sm:$0xf]
    %v690 = vld [vmem:[#allocation4 + $0x10c] sm:$0xf]
    %v691 = vld [vmem:[#allocation4 + $0x110] sm:$0xf]
    %v692 = vld [vmem:[#allocation4 + $0x114] sm:$0xf]
    %v693 = vld [vmem:[#allocation4 + $0x118] sm:$0xf]
    %v694 = vld [vmem:[#allocation4 + $0x11c] sm:$0xf]
    %v695 = vld [vmem:[#allocation4 + $0x120] sm:$0xf]
    %v696 = vld [vmem:[#allocation4 + $0x124] sm:$0xf]
    %v697 = vld [vmem:[#allocation4 + $0x128] sm:$0xf]
    %v698 = vld [vmem:[#allocation4 + $0x12c] sm:$0xf]
    %v699 = vld [vmem:[#allocation4 + $0x130] sm:$0xf]
    %v700 = vld [vmem:[#allocation4 + $0x134] sm:$0xf]
    %v701 = vld [vmem:[#allocation4 + $0x138] sm:$0xf]
    %v702 = vld [vmem:[#allocation4 + $0x13c] sm:$0xf]
    %v703 = vld [vmem:[#allocation4 + $0x140] sm:$0xf]
    %v704 = vld [vmem:[#allocation4 + $0x144] sm:$0xf]
    %v705 = vld [vmem:[#allocation4 + $0x148] sm:$0xf]
    %v706 = vld [vmem:[#allocation4 + $0x14c] sm:$0xf]
    %v707 = vld [vmem:[#allocation4 + $0x150] sm:$0xf]
    %v708 = vld [vmem:[#allocation4 + $0x154] sm:$0xf]
    %v709 = vld [vmem:[#allocation4 + $0x158] sm:$0xf]
    %v710 = vld [vmem:[#allocation4 + $0x15c] sm:$0xf]
    %v711 = vld [vmem:[#allocation4 + $0x160] sm:$0xf]
    %v712 = vld [vmem:[#allocation4 + $0x164] sm:$0xf]
    %v713 = vld [vmem:[#allocation4 + $0x168] sm:$0xf]
    %v714 = vld [vmem:[#allocation4 + $0x16c] sm:$0xf]
    %v715 = vld [vmem:[#allocation4 + $0x170] sm:$0xf]
    %v716 = vld [vmem:[#allocation4 + $0x174] sm:$0xf]
    %v717 = vld [vmem:[#allocation4 + $0x178] sm:$0xf]
    %v718 = vld [vmem:[#allocation4 + $0x17c] sm:$0xf]
    %v719 = vld [vmem:[#allocation4 + $0x180] sm:$0xf]
    %v720 = vld [vmem:[#allocation4 + $0x184] sm:$0xf]
    %v721 = vld [vmem:[#allocation4 + $0x188] sm:$0xf]
    %v722 = vld [vmem:[#allocation4 + $0x18c] sm:$0xf]
    %v723 = vld [vmem:[#allocation4 + $0x190] sm:$0xf]
    %v724 = vld [vmem:[#allocation4 + $0x194] sm:$0xf]
    %v725 = vld [vmem:[#allocation4 + $0x198] sm:$0xf]
    %v726 = vld [vmem:[#allocation4 + $0x19c] sm:$0xf]
    %v727 = vld [vmem:[#allocation4 + $0x1a0] sm:$0xf]
    %v728 = vld [vmem:[#allocation4 + $0x1a4] sm:$0xf]
    %v729 = vld [vmem:[#allocation4 + $0x1a8] sm:$0xf]
    %v730 = vld [vmem:[#allocation4 + $0x1ac] sm:$0xf]
    %v731 = vld [vmem:[#allocation4 + $0x1b0] sm:$0xf]
    %v732 = vld [vmem:[#allocation4 + $0x1b4] sm:$0xf]
    %v733 = vld [vmem:[#allocation4 + $0x1b8] sm:$0xf]
    %v734 = vld [vmem:[#allocation4 + $0x1bc] sm:$0xf]
    %v735 = vld [vmem:[#allocation4 + $0x1c0] sm:$0xf]
    %v736 = vld [vmem:[#allocation4 + $0x1c4] sm:$0xf]
    %v737 = vld [vmem:[#allocation4 + $0x1c8] sm:$0xf]
    %v738 = vld [vmem:[#allocation4 + $0x1cc] sm:$0xf]
    %v739 = vld [vmem:[#allocation4 + $0x1d0] sm:$0xf]
    %v740 = vld [vmem:[#allocation4 + $0x1d4] sm:$0xf]
    %v741 = vld [vmem:[#allocation4 + $0x1d8] sm:$0xf]
    %v742 = vld [vmem:[#allocation4 + $0x1dc] sm:$0xf]
    %v743 = vld [vmem:[#allocation4 + $0x1e0] sm:$0xf]
    %v744 = vld [vmem:[#allocation4 + $0x1e4] sm:$0xf]
    %v745 = vld [vmem:[#allocation4 + $0x1e8] sm:$0xf]
    %v746 = vld [vmem:[#allocation4 + $0x1ec] sm:$0xf]
    %v747 = vld [vmem:[#allocation4 + $0x1f0] sm:$0xf]
    %v748 = vld [vmem:[#allocation4 + $0x1f4] sm:$0xf]
    %v749 = vld [vmem:[#allocation4 + $0x1f8] sm:$0xf]
    %v750 = vld [vmem:[#allocation4 + $0x1fc] sm:$0xf]
    %v751 = vunpack.c.l.bf16 %v623
    %v752 = vunpack.c.l.bf16 %v624
    %v753 = vunpack.c.l.bf16 %v625
    %v754 = vunpack.c.l.bf16 %v626
    %v755 = vunpack.c.l.bf16 %v627
    %v756 = vunpack.c.l.bf16 %v628
    %v757 = vunpack.c.l.bf16 %v629
    %v758 = vunpack.c.l.bf16 %v630
    %v759 = vunpack.c.l.bf16 %v631
    %v760 = vunpack.c.l.bf16 %v632
    %v761 = vunpack.c.l.bf16 %v633
    %v762 = vunpack.c.l.bf16 %v634
    %v763 = vunpack.c.l.bf16 %v635
    %v764 = vunpack.c.l.bf16 %v636
    %v765 = vunpack.c.l.bf16 %v637
    %v766 = vunpack.c.l.bf16 %v638
    %v767 = vunpack.c.l.bf16 %v639
    %v768 = vunpack.c.l.bf16 %v640
    %v769 = vunpack.c.l.bf16 %v641
    %v770 = vunpack.c.l.bf16 %v642
    %v771 = vunpack.c.l.bf16 %v643
    %v772 = vunpack.c.l.bf16 %v644
    %v773 = vunpack.c.l.bf16 %v645
    %v774 = vunpack.c.l.bf16 %v646
    %v775 = vunpack.c.l.bf16 %v647
    %v776 = vunpack.c.l.bf16 %v648
    %v777 = vunpack.c.l.bf16 %v649
    %v778 = vunpack.c.l.bf16 %v650
    %v779 = vunpack.c.l.bf16 %v651
    %v780 = vunpack.c.l.bf16 %v652
    %v781 = vunpack.c.l.bf16 %v653
    %v782 = vunpack.c.l.bf16 %v654
    %v783 = vunpack.c.l.bf16 %v655
    %v784 = vunpack.c.l.bf16 %v656
    %v785 = vunpack.c.l.bf16 %v657
    %v786 = vunpack.c.l.bf16 %v658
    %v787 = vunpack.c.l.bf16 %v659
    %v788 = vunpack.c.l.bf16 %v660
    %v789 = vunpack.c.l.bf16 %v661
    %v790 = vunpack.c.l.bf16 %v662
    %v791 = vunpack.c.l.bf16 %v663
    %v792 = vunpack.c.l.bf16 %v664
    %v793 = vunpack.c.l.bf16 %v665
    %v794 = vunpack.c.l.bf16 %v666
    %v795 = vunpack.c.l.bf16 %v667
    %v796 = vunpack.c.l.bf16 %v668
    %v797 = vunpack.c.l.bf16 %v669
    %v798 = vunpack.c.l.bf16 %v670
    %v799 = vunpack.c.l.bf16 %v671
    %v800 = vunpack.c.l.bf16 %v672
    %v801 = vunpack.c.l.bf16 %v673
    %v802 = vunpack.c.l.bf16 %v674
    %v803 = vunpack.c.l.bf16 %v675
    %v804 = vunpack.c.l.bf16 %v676
    %v805 = vunpack.c.l.bf16 %v677
    %v806 = vunpack.c.l.bf16 %v678
    %v807 = vunpack.c.l.bf16 %v679
    %v808 = vunpack.c.l.bf16 %v680
    %v809 = vunpack.c.l.bf16 %v681
    %v810 = vunpack.c.l.bf16 %v682
    %v811 = vunpack.c.l.bf16 %v683
    %v812 = vunpack.c.l.bf16 %v684
    %v813 = vunpack.c.l.bf16 %v685
    %v814 = vunpack.c.l.bf16 %v686
    %v815 = vunpack.c.l.bf16 %v687
    %v816 = vunpack.c.l.bf16 %v688
    %v817 = vunpack.c.l.bf16 %v689
    %v818 = vunpack.c.l.bf16 %v690
    %v819 = vunpack.c.l.bf16 %v691
    %v820 = vunpack.c.l.bf16 %v692
    %v821 = vunpack.c.l.bf16 %v693
    %v822 = vunpack.c.l.bf16 %v694
    %v823 = vunpack.c.l.bf16 %v695
    %v824 = vunpack.c.l.bf16 %v696
    %v825 = vunpack.c.l.bf16 %v697
    %v826 = vunpack.c.l.bf16 %v698
    %v827 = vunpack.c.l.bf16 %v699
    %v828 = vunpack.c.l.bf16 %v700
    %v829 = vunpack.c.l.bf16 %v701
    %v830 = vunpack.c.l.bf16 %v702
    %v831 = vunpack.c.l.bf16 %v703
    %v832 = vunpack.c.l.bf16 %v704
    %v833 = vunpack.c.l.bf16 %v705
    %v834 = vunpack.c.l.bf16 %v706
    %v835 = vunpack.c.l.bf16 %v707
    %v836 = vunpack.c.l.bf16 %v708
    %v837 = vunpack.c.l.bf16 %v709
    %v838 = vunpack.c.l.bf16 %v710
    %v839 = vunpack.c.l.bf16 %v711
    %v840 = vunpack.c.l.bf16 %v712
    %v841 = vunpack.c.l.bf16 %v713
    %v842 = vunpack.c.l.bf16 %v714
    %v843 = vunpack.c.l.bf16 %v715
    %v844 = vunpack.c.l.bf16 %v716
    %v845 = vunpack.c.l.bf16 %v717
    %v846 = vunpack.c.l.bf16 %v718
    %v847 = vunpack.c.l.bf16 %v719
    %v848 = vunpack.c.l.bf16 %v720
    %v849 = vunpack.c.l.bf16 %v721
    %v850 = vunpack.c.l.bf16 %v722
    %v851 = vunpack.c.l.bf16 %v723
    %v852 = vunpack.c.l.bf16 %v724
    %v853 = vunpack.c.l.bf16 %v725
    %v854 = vunpack.c.l.bf16 %v726
    %v855 = vunpack.c.l.bf16 %v727
    %v856 = vunpack.c.l.bf16 %v728
    %v857 = vunpack.c.l.bf16 %v729
    %v858 = vunpack.c.l.bf16 %v730
    %v859 = vunpack.c.l.bf16 %v731
    %v860 = vunpack.c.l.bf16 %v732
    %v861 = vunpack.c.l.bf16 %v733
    %v862 = vunpack.c.l.bf16 %v734
    %v863 = vunpack.c.l.bf16 %v735
    %v864 = vunpack.c.l.bf16 %v736
    %v865 = vunpack.c.l.bf16 %v737
    %v866 = vunpack.c.l.bf16 %v738
    %v867 = vunpack.c.l.bf16 %v739
    %v868 = vunpack.c.l.bf16 %v740
    %v869 = vunpack.c.l.bf16 %v741
    %v870 = vunpack.c.l.bf16 %v742
    %v871 = vunpack.c.l.bf16 %v743
    %v872 = vunpack.c.l.bf16 %v744
    %v873 = vunpack.c.l.bf16 %v745
    %v874 = vunpack.c.l.bf16 %v746
    %v875 = vunpack.c.l.bf16 %v747
    %v876 = vunpack.c.l.bf16 %v748
    %v877 = vunpack.c.l.bf16 %v749
    %v878 = vunpack.c.l.bf16 %v750
    %879 = vmatprep.subr.mxu0 0.0
    %880 = vmatpush1.msra.mxu0 %v751
    %881 = vmatprep.subr.mxu0 0.0
    %882 = vmatpush1.msra.mxu0 %v752
    %883 = vmatprep.subr.mxu0 0.0
    %884 = vmatpush1.msra.mxu0 %v753
    %885 = vmatprep.subr.mxu0 0.0
    %886 = vmatpush1.msra.mxu0 %v754
    %887 = vmatprep.subr.mxu0 0.0
    %888 = vmatpush1.msra.mxu0 %v755
    %889 = vmatprep.subr.mxu0 0.0
    %890 = vmatpush1.msra.mxu0 %v756
    %891 = vmatprep.subr.mxu0 0.0
    %892 = vmatpush1.msra.mxu0 %v757
    %893 = vmatprep.subr.mxu0 0.0
    %894 = vmatpush1.msra.mxu0 %v758
    %895 = vmatprep.subr.mxu0 0.0
    %896 = vmatpush1.msra.mxu0 %v759
    %897 = vmatprep.subr.mxu0 0.0
    %898 = vmatpush1.msra.mxu0 %v760
    %899 = vmatprep.subr.mxu0 0.0
    %900 = vmatpush1.msra.mxu0 %v761
    %901 = vmatprep.subr.mxu0 0.0
    %902 = vmatpush1.msra.mxu0 %v762
    %903 = vmatprep.subr.mxu0 0.0
    %904 = vmatpush1.msra.mxu0 %v763
    %905 = vmatprep.subr.mxu0 0.0
    %906 = vmatpush1.msra.mxu0 %v764
    %907 = vmatprep.subr.mxu0 0.0
    %908 = vmatpush1.msra.mxu0 %v765
    %909 = vmatprep.subr.mxu0 0.0
    %910 = vmatpush1.msra.mxu0 %v766
    %911 = vmatprep.subr.mxu0 0.0
    %912 = vmatpush1.msra.mxu0 %v767
    %913 = vmatprep.subr.mxu0 0.0
    %914 = vmatpush1.msra.mxu0 %v768
    %915 = vmatprep.subr.mxu0 0.0
    %916 = vmatpush1.msra.mxu0 %v769
    %917 = vmatprep.subr.mxu0 0.0
    %918 = vmatpush1.msra.mxu0 %v770
    %919 = vmatprep.subr.mxu0 0.0
    %920 = vmatpush1.msra.mxu0 %v771
    %921 = vmatprep.subr.mxu0 0.0
    %922 = vmatpush1.msra.mxu0 %v772
    %923 = vmatprep.subr.mxu0 0.0
    %924 = vmatpush1.msra.mxu0 %v773
    %925 = vmatprep.subr.mxu0 0.0
    %926 = vmatpush1.msra.mxu0 %v774
    %927 = vmatprep.subr.mxu0 0.0
    %928 = vmatpush1.msra.mxu0 %v775
    %929 = vmatprep.subr.mxu0 0.0
    %930 = vmatpush1.msra.mxu0 %v776
    %931 = vmatprep.subr.mxu0 0.0
    %932 = vmatpush1.msra.mxu0 %v777
    %933 = vmatprep.subr.mxu0 0.0
    %934 = vmatpush1.msra.mxu0 %v778
    %935 = vmatprep.subr.mxu0 0.0
    %936 = vmatpush1.msra.mxu0 %v779
    %937 = vmatprep.subr.mxu0 0.0
    %938 = vmatpush1.msra.mxu0 %v780
    %939 = vmatprep.subr.mxu0 0.0
    %940 = vmatpush1.msra.mxu0 %v781
    %941 = vmatprep.subr.mxu0 0.0
    %942 = vmatpush1.msra.mxu0 %v782
    %943 = vmatprep.mubr.f32.mxu0 %v616
    %944 = vmatmul.mubr.f32.gmra.mrb[0].mxu0 %v615
    %v945 = vpop.f32.mrb[0].mxu0
    %v946 = vadd.f32 0.0, %v945
    %v947 = vpop.f32.mrb[0].mxu0
    %948 = vdwg.mxu0
    %949 = vmatprep.subr.mxu0 0.0
    %950 = vmatpush1.msra.mxu0 %v783
    %951 = vmatprep.subr.mxu0 0.0
    %952 = vmatpush1.msra.mxu0 %v784
    %953 = vmatprep.subr.mxu0 0.0
    %954 = vmatpush1.msra.mxu0 %v785
    %955 = vmatprep.subr.mxu0 0.0
    %956 = vmatpush1.msra.mxu0 %v786
    %957 = vmatprep.subr.mxu0 0.0
    %958 = vmatpush1.msra.mxu0 %v787
    %959 = vmatprep.subr.mxu0 0.0
    %960 = vmatpush1.msra.mxu0 %v788
    %961 = vmatprep.subr.mxu0 0.0
    %962 = vmatpush1.msra.mxu0 %v789
    %963 = vmatprep.subr.mxu0 0.0
    %964 = vmatpush1.msra.mxu0 %v790
    %965 = vmatprep.subr.mxu0 0.0
    %966 = vmatpush1.msra.mxu0 %v791
    %967 = vmatprep.subr.mxu0 0.0
    %968 = vmatpush1.msra.mxu0 %v792
    %969 = vmatprep.subr.mxu0 0.0
    %970 = vmatpush1.msra.mxu0 %v793
    %971 = vmatprep.subr.mxu0 0.0
    %972 = vmatpush1.msra.mxu0 %v794
    %973 = vmatprep.subr.mxu0 0.0
    %974 = vmatpush1.msra.mxu0 %v795
    %975 = vmatprep.subr.mxu0 0.0
    %976 = vmatpush1.msra.mxu0 %v796
    %977 = vmatprep.subr.mxu0 0.0
    %978 = vmatpush1.msra.mxu0 %v797
    %979 = vmatprep.subr.mxu0 0.0
    %980 = vmatpush1.msra.mxu0 %v798
    %981 = vmatprep.subr.mxu0 0.0
    %982 = vmatpush1.msra.mxu0 %v799
    %983 = vmatprep.subr.mxu0 0.0
    %984 = vmatpush1.msra.mxu0 %v800
    %985 = vmatprep.subr.mxu0 0.0
    %986 = vmatpush1.msra.mxu0 %v801
    %987 = vmatprep.subr.mxu0 0.0
    %988 = vmatpush1.msra.mxu0 %v802
    %989 = vmatprep.subr.mxu0 0.0
    %990 = vmatpush1.msra.mxu0 %v803
    %991 = vmatprep.subr.mxu0 0.0
    %992 = vmatpush1.msra.mxu0 %v804
    %993 = vmatprep.subr.mxu0 0.0
    %994 = vmatpush1.msra.mxu0 %v805
    %995 = vmatprep.subr.mxu0 0.0
    %996 = vmatpush1.msra.mxu0 %v806
    %997 = vmatprep.subr.mxu0 0.0
    %998 = vmatpush1.msra.mxu0 %v807
    %999 = vmatprep.subr.mxu0 0.0
    %1000 = vmatpush1.msra.mxu0 %v808
    %1001 = vmatprep.subr.mxu0 0.0
    %1002 = vmatpush1.msra.mxu0 %v809
    %1003 = vmatprep.subr.mxu0 0.0
    %1004 = vmatpush1.msra.mxu0 %v810
    %1005 = vmatprep.subr.mxu0 0.0
    %1006 = vmatpush1.msra.mxu0 %v811
    %1007 = vmatprep.subr.mxu0 0.0
    %1008 = vmatpush1.msra.mxu0 %v812
    %1009 = vmatprep.subr.mxu0 0.0
    %1010 = vmatpush1.msra.mxu0 %v813
    %1011 = vmatprep.subr.mxu0 0.0
    %1012 = vmatpush1.msra.mxu0 %v814
    %1013 = vmatprep.mubr.f32.mxu0 %v618
    %1014 = vmatmul.mubr.f32.gmra.mrb[0].mxu0 %v617
    %v1015 = vpop.f32.mrb[0].mxu0
    %v1016 = vadd.f32 %v946, %v1015
    %v1017 = vpop.f32.mrb[0].mxu0
    %1018 = vdwg.mxu0
    %1019 = vmatprep.subr.mxu0 0.0
    %1020 = vmatpush1.msra.mxu0 %v815
    %1021 = vmatprep.subr.mxu0 0.0
    %1022 = vmatpush1.msra.mxu0 %v816
    %1023 = vmatprep.subr.mxu0 0.0
    %1024 = vmatpush1.msra.mxu0 %v817
    %1025 = vmatprep.subr.mxu0 0.0
    %1026 = vmatpush1.msra.mxu0 %v818
    %1027 = vmatprep.subr.mxu0 0.0
    %1028 = vmatpush1.msra.mxu0 %v819
    %1029 = vmatprep.subr.mxu0 0.0
    %1030 = vmatpush1.msra.mxu0 %v820
    %1031 = vmatprep.subr.mxu0 0.0
    %1032 = vmatpush1.msra.mxu0 %v821
    %1033 = vmatprep.subr.mxu0 0.0
    %1034 = vmatpush1.msra.mxu0 %v822
    %1035 = vmatprep.subr.mxu0 0.0
    %1036 = vmatpush1.msra.mxu0 %v823
    %1037 = vmatprep.subr.mxu0 0.0
    %1038 = vmatpush1.msra.mxu0 %v824
    %1039 = vmatprep.subr.mxu0 0.0
    %1040 = vmatpush1.msra.mxu0 %v825
    %1041 = vmatprep.subr.mxu0 0.0
    %1042 = vmatpush1.msra.mxu0 %v826
    %1043 = vmatprep.subr.mxu0 0.0
    %1044 = vmatpush1.msra.mxu0 %v827
    %1045 = vmatprep.subr.mxu0 0.0
    %1046 = vmatpush1.msra.mxu0 %v828
    %1047 = vmatprep.subr.mxu0 0.0
    %1048 = vmatpush1.msra.mxu0 %v829
    %1049 = vmatprep.subr.mxu0 0.0
    %1050 = vmatpush1.msra.mxu0 %v830
    %1051 = vmatprep.subr.mxu0 0.0
    %1052 = vmatpush1.msra.mxu0 %v831
    %1053 = vmatprep.subr.mxu0 0.0
    %1054 = vmatpush1.msra.mxu0 %v832
    %1055 = vmatprep.subr.mxu0 0.0
    %1056 = vmatpush1.msra.mxu0 %v833
    %1057 = vmatprep.subr.mxu0 0.0
    %1058 = vmatpush1.msra.mxu0 %v834
    %1059 = vmatprep.subr.mxu0 0.0
    %1060 = vmatpush1.msra.mxu0 %v835
    %1061 = vmatprep.subr.mxu0 0.0
    %1062 = vmatpush1.msra.mxu0 %v836
    %1063 = vmatprep.subr.mxu0 0.0
    %1064 = vmatpush1.msra.mxu0 %v837
    %1065 = vmatprep.subr.mxu0 0.0
    %1066 = vmatpush1.msra.mxu0 %v838
    %1067 = vmatprep.subr.mxu0 0.0
    %1068 = vmatpush1.msra.mxu0 %v839
    %1069 = vmatprep.subr.mxu0 0.0
    %1070 = vmatpush1.msra.mxu0 %v840
    %1071 = vmatprep.subr.mxu0 0.0
    %1072 = vmatpush1.msra.mxu0 %v841
    %1073 = vmatprep.subr.mxu0 0.0
    %1074 = vmatpush1.msra.mxu0 %v842
    %1075 = vmatprep.subr.mxu0 0.0
    %1076 = vmatpush1.msra.mxu0 %v843
    %1077 = vmatprep.subr.mxu0 0.0
    %1078 = vmatpush1.msra.mxu0 %v844
    %1079 = vmatprep.subr.mxu0 0.0
    %1080 = vmatpush1.msra.mxu0 %v845
    %1081 = vmatprep.subr.mxu0 0.0
    %1082 = vmatpush1.msra.mxu0 %v846
    %1083 = vmatprep.mubr.f32.mxu0 %v620
    %1084 = vmatmul.mubr.f32.gmra.mrb[0].mxu0 %v619
    %v1085 = vpop.f32.mrb[0].mxu0
    %v1086 = vadd.f32 %v1016, %v1085
    %v1087 = vpop.f32.mrb[0].mxu0
    %1088 = vdwg.mxu0
    %1089 = vmatprep.subr.mxu0 0.0
    %1090 = vmatpush1.msra.mxu0 %v847
    %1091 = vmatprep.subr.mxu0 0.0
    %1092 = vmatpush1.msra.mxu0 %v848
    %1093 = vmatprep.subr.mxu0 0.0
    %1094 = vmatpush1.msra.mxu0 %v849
    %1095 = vmatprep.subr.mxu0 0.0
    %1096 = vmatpush1.msra.mxu0 %v850
    %1097 = vmatprep.subr.mxu0 0.0
    %1098 = vmatpush1.msra.mxu0 %v851
    %1099 = vmatprep.subr.mxu0 0.0
    %1100 = vmatpush1.msra.mxu0 %v852
    %1101 = vmatprep.subr.mxu0 0.0
    %1102 = vmatpush1.msra.mxu0 %v853
    %1103 = vmatprep.subr.mxu0 0.0
    %1104 = vmatpush1.msra.mxu0 %v854
    %1105 = vmatprep.subr.mxu0 0.0
    %1106 = vmatpush1.msra.mxu0 %v855
    %1107 = vmatprep.subr.mxu0 0.0
    %1108 = vmatpush1.msra.mxu0 %v856
    %1109 = vmatprep.subr.mxu0 0.0
    %1110 = vmatpush1.msra.mxu0 %v857
    %1111 = vmatprep.subr.mxu0 0.0
    %1112 = vmatpush1.msra.mxu0 %v858
    %1113 = vmatprep.subr.mxu0 0.0
    %1114 = vmatpush1.msra.mxu0 %v859
    %1115 = vmatprep.subr.mxu0 0.0
    %1116 = vmatpush1.msra.mxu0 %v860
    %1117 = vmatprep.subr.mxu0 0.0
    %1118 = vmatpush1.msra.mxu0 %v861
    %1119 = vmatprep.subr.mxu0 0.0
    %1120 = vmatpush1.msra.mxu0 %v862
    %1121 = vmatprep.subr.mxu0 0.0
    %1122 = vmatpush1.msra.mxu0 %v863
    %1123 = vmatprep.subr.mxu0 0.0
    %1124 = vmatpush1.msra.mxu0 %v864
    %1125 = vmatprep.subr.mxu0 0.0
    %1126 = vmatpush1.msra.mxu0 %v865
    %1127 = vmatprep.subr.mxu0 0.0
    %1128 = vmatpush1.msra.mxu0 %v866
    %1129 = vmatprep.subr.mxu0 0.0
    %1130 = vmatpush1.msra.mxu0 %v867
    %1131 = vmatprep.subr.mxu0 0.0
    %1132 = vmatpush1.msra.mxu0 %v868
    %1133 = vmatprep.subr.mxu0 0.0
    %1134 = vmatpush1.msra.mxu0 %v869
    %1135 = vmatprep.subr.mxu0 0.0
    %1136 = vmatpush1.msra.mxu0 %v870
    %1137 = vmatprep.subr.mxu0 0.0
    %1138 = vmatpush1.msra.mxu0 %v871
    %1139 = vmatprep.subr.mxu0 0.0
    %1140 = vmatpush1.msra.mxu0 %v872
    %1141 = vmatprep.subr.mxu0 0.0
    %1142 = vmatpush1.msra.mxu0 %v873
    %1143 = vmatprep.subr.mxu0 0.0
    %1144 = vmatpush1.msra.mxu0 %v874
    %1145 = vmatprep.subr.mxu0 0.0
    %1146 = vmatpush1.msra.mxu0 %v875
    %1147 = vmatprep.subr.mxu0 0.0
    %1148 = vmatpush1.msra.mxu0 %v876
    %1149 = vmatprep.subr.mxu0 0.0
    %1150 = vmatpush1.msra.mxu0 %v877
    %1151 = vmatprep.subr.mxu0 0.0
    %1152 = vmatpush1.msra.mxu0 %v878
    %1153 = vmatprep.mubr.f32.mxu0 %v622
    %1154 = vmatmul.mubr.f32.gmra.mrb[0].mxu0 %v621
    %v1155 = vpop.f32.mrb[0].mxu0
    %v1156 = vadd.f32 %v1086, %v1155
    %v1157 = vpop.f32.mrb[0].mxu0
    %1158 = vdwg.mxu0
    %1159 = vst [vmem:[%s7] sm:$0xff] %v390
    %1160 = vst [vmem:[%s7 + $0x8] sm:$0xff] %v392
    %1161 = vst [vmem:[%s7 + $0x10] sm:$0xff] %v461
    %1162 = vst [vmem:[%s7 + $0x18] sm:$0xff] %v463
    %1163 = vst [vmem:[%s7 + $0x20] sm:$0xff] %v532
    %1164 = vst [vmem:[%s7 + $0x28] sm:$0xff] %v534
    %1165 = vst [vmem:[%s7 + $0x30] sm:$0xff] %v603
    %1166 = vst [vmem:[%s7 + $0x38] sm:$0xff] %v605
    %1167 = vst [vmem:[%s8] sm:$0xff] %v1156
    // Predicated region
    $region38: #{_forward_impl.1} parent=1 // pred_check
      _
    $region39: #{_forward_impl.1} parent=1 // pred_check_branch
      %1169 = sbr.rel (0) target = $region41
    $region40: #{_forward_impl.1} parent=1 // pred_region
      _
    $region41: #{_forward_impl.1} parent=1 // pred_fallthru
      _
    // Predicated region
    $region42: #{_forward_impl.1} parent=1 // pred_check
      _
    $region43: #{_forward_impl.1} parent=1 // pred_check_branch
      %1171 = sbr.rel (0) target = $region45
    $region44: #{_forward_impl.1} parent=1 // pred_region
      _
    $region45: #{_forward_impl.1} parent=1 // pred_fallthru
      _
    // Predicated region
    $region46: #{_forward_impl.1} parent=1 // pred_check
      _
    $region47: #{_forward_impl.1} parent=1 // pred_check_branch
      %1173 = sbr.rel (0) target = $region49
    $region48: #{_forward_impl.1} parent=1 // pred_region
      _
    $region49: #{_forward_impl.1} parent=1 // pred_fallthru
      _
    // Predicated region
    $region50: #{_forward_impl.1} parent=1 // pred_check
      _
    $region51: #{_forward_impl.1} parent=1 // pred_check_branch
      %1175 = sbr.rel (0) target = $region53
    $region52: #{_forward_impl.1} parent=1 // pred_region
      _
    $region53: #{_forward_impl.1} parent=1 // pred_fallthru
      _
    %1176 = vsyncpa [#allocation3], 1
    %1177 = vsyncpa [#allocation5], 1

</llo_original>
